<compile_context>
chip_gen: v5e
topology: v5e:2x2
jax: 0.10.0
libtpu: 0.0.40
codegen_flags: <defaults>
</compile_context>

<pallas_src>
import numpy as np
import jax
import jax.numpy as jnp
from jax import lax
from jax.experimental import pallas as pl
from jax.experimental.pallas import tpu as pltpu

# ----- small, module-consistent configuration -----
B = 2            # batch
C_EEG = 8        # n_channels
T = 128          # n_samples
F1 = 8           # EEGNet temporal filters
D = 2            # depth multiplier
F2 = F1 * D      # separable-conv output filters (16)
K1 = 7           # conv1 temporal kernel ('same', pad K1//2)
K3 = 7           # conv3 depthwise temporal kernel ('same', pad K3//2)
PAD1 = K1 // 2
PAD3 = K3 // 2
P1 = 4           # AvgPool(1,4)
P2 = 8           # AvgPool(1,8)
T1 = T // P1     # 32
T2 = T1 // P2    # 4
FEAT = F2 * T2   # feature_dim == repr_layer.in_features (64)
E = 32           # embed_dim
EPS = 1e-5

# roll-as-zero-pad preconditions (kernel-size change must not silently corrupt boundaries)
assert PAD1 <= T, "conv1 circular-roll trick requires PAD1 <= T"
assert PAD3 <= T - T1, "conv3 circular-roll trick requires PAD3 <= T - T1"

# packed parameter-slab lane layout (static offsets, multiples of 8)
SL_WMIX = 0                  # lanes [0:8)    conv2 spatial mix      (F2, C_EEG)
SL_PP = C_EEG                # lanes [8:24)   folded taps / biases   (F2, 16)
SL_W4 = SL_PP + 16           # lanes [24:40)  conv4 x BN3 scale      (F2, F2)
SL_BR = SL_W4 + F2           # lanes [40:72)  repr_layer bias (row 0)
SLAB_W = 128                 # one lane tile
SLAB_R = F2 + T              # 16 param rows + 128 pool1-matrix rows


def _elu(x):
    # ELU(alpha=1); exp argument clamped so the unselected branch stays finite.
    return jnp.where(x > 0, x, jnp.exp(jnp.minimum(x, 0.0)) - 1.0)


# --------------------------- Pallas kernel (one batch sample per grid step) ---------------------------
def brain_encoder_kernel(x_ref, slab_ref, wrt_ref, o_ref, fl_ref):
    # ---- unpack the parameter slab (one DMA feeds every small parameter) ----
    wmix = slab_ref[0:F2, SL_WMIX:SL_WMIX + C_EEG]       # (F2, C_EEG) conv2 spatial mix
    pp = slab_ref[0:F2, SL_PP:SL_PP + 16]                # (F2, 16)    taps + folded BN shifts
    w4s = slab_ref[0:F2, SL_W4:SL_W4 + F2]               # (F2, F2)    conv4 (BN3 scale folded)
    br = slab_ref[0:1, SL_BR:SL_BR + E]                  # (1, E)      repr_layer bias
    p1m = slab_ref[F2:F2 + T, :]                         # (T, T)      AvgPool(1,4); cols >= T1 are 0

    x = x_ref[...]                                       # (C_EEG, 2T); lanes >= T are zero

    # ---- Block 1: spatial mix (conv2) then temporal conv1 as 7-tap roll+MAC (BN1/BN2 folded) ----
    u = jnp.dot(wmix, x, preferred_element_type=jnp.float32)            # (F2, 2T)
    acc = jnp.zeros_like(u)
    for k in range(K1):
        sh = (PAD1 - k) % (2 * T)
        v = u if sh == 0 else pltpu.roll(u, sh, 1)       # circular roll over zero pad == 'same'
        acc = acc + pp[:, k:k + 1] * v                   # per-row tap (s2*s1*w1 folded)
    y2 = _elu(acc + pp[:, K1:K1 + 1])                    # (F2, 2T); only [:, :T] meaningful

    # ---- AvgPool(1,4) as one matmul; output lanes >= T1 are exactly zero ----
    z1 = jnp.dot(y2[:, :T], p1m, preferred_element_type=jnp.float32)    # (F2, T), valid in [:T1]

    # ---- Block 2: depthwise temporal conv3 as 7-tap roll+MAC ----
    acc3 = jnp.zeros_like(z1)
    for k in range(K3):
        sh = (PAD3 - k) % T
        v = z1 if sh == 0 else pltpu.roll(z1, sh, 1)
        acc3 = acc3 + pp[:, 8 + k:9 + k] * v
    # zero wrapped lanes >= T1 so everything downstream is well-defined (robustness)
    lane = lax.broadcasted_iota(jnp.int32, (F2, T), 1)
    acc3 = jnp.where(lane < T1, acc3, 0.0)

    # ---- pointwise conv4 (BN3 scale folded) + BN3 shift + ELU ----
    y4 = _elu(jnp.dot(w4s, acc3, preferred_element_type=jnp.float32)
              + pp[:, 15:16])                            # (F2, T); only [:, :T1] consumed

    # ---- AvgPool(1,8) + flatten + repr_layer == ONE dense K=F2*T1 matmul ----
    # Flatten (F2, T1) -> (1, F2*T1): sublane->lane relayout done via a tiny VMEM scratch row
    # (static masked stores), which lowers unconditionally.
    for f in range(F2):
        fl_ref[0:1, f * T1:(f + 1) * T1] = y4[f:f + 1, :T1]
    feat = fl_ref[0:1, :]                                                # (1, F2*T1)
    o_ref[0] = jnp.dot(feat, wrt_ref[...], preferred_element_type=jnp.float32) + br


# --------------------------- wrapper-side parameter / layout glue ---------------------------
def pool_matrix(L, p):
    return ((jnp.arange(L)[:, None] // p) == jnp.arange(L // p)[None, :]
            ).astype(jnp.float32) / p


def prepare_kernel_inputs(x, raw):
    s1, b1, s2, b2, s3, b3 = raw['s1'], raw['b1'], raw['s2'], raw['b2'], raw['s3'], raw['b3']

    # input rows = (batch, eeg-channel); zero lanes [T, 2T) make circular rolls == zero padding
    x2 = x[:, 0].reshape(B * C_EEG, T)
    xpad = jnp.concatenate([x2, jnp.zeros_like(x2)], axis=1)            # (B*C_EEG, 2T)

    w2flat = raw['w2'].reshape(F2, C_EEG)                               # row r = f*D + d
    f_of_r = jnp.arange(F2) // D
    tap1 = (s2[:, None] * s1[f_of_r][:, None]) * raw['w1'][f_of_r]      # (F2, K1): s2*s1*w1
    bias1 = s2 * b1[f_of_r] * jnp.sum(w2flat, axis=1) + b2              # folded BN1/BN2 shift
    pp = jnp.concatenate([tap1, bias1[:, None], raw['w3'], b3[:, None]], axis=1)   # (F2, 16)
    w4s = s3[:, None] * raw['w4']                                       # BN3 scale folded

    # AvgPool(1,4) matrix (T, T); columns >= T1 are zero so the conv3 roll trick needs no masks
    p1m = ((jnp.arange(T)[:, None] // P1) == jnp.arange(T)[None, :]).astype(jnp.float32) / P1

    # single lane-dense parameter slab -> one DMA descriptor for all small params
    slab = jnp.zeros((SLAB_R, SLAB_W), jnp.float32)
    slab = slab.at[0:F2, SL_WMIX:SL_WMIX + C_EEG].set(w2flat)
    slab = slab.at[0:F2, SL_PP:SL_PP + 16].set(pp)
    slab = slab.at[0:F2, SL_W4:SL_W4 + F2].set(w4s)
    slab = slab.at[0, SL_BR:SL_BR + E].set(raw['br'])
    slab = slab.at[F2:F2 + T, :].set(p1m)

    # fold AvgPool(1,8) + flatten + repr_layer into one dense weight:
    #   wrt[f*T1 + w, e] = sum_z p2m[w, z] * wr[e, f*T2 + z]
    p2m = pool_matrix(T1, P2)                                           # (T1, T2)
    wr3 = raw['wr'].reshape(E, F2, T2)                                  # (E, F2, T2)
    wrt = jnp.einsum('wz,efz->fwe', p2m, wr3).reshape(F2 * T1, E)       # (F2*T1, E)

    return xpad, slab, wrt


def brain_encoder_forward(x, raw):
    xpad, slab, wrt = prepare_kernel_inputs(x, raw)

    flops = B * (2 * F2 * C_EEG * 2 * T          # spatial mix
                 + 2 * K1 * F2 * 2 * T           # conv1 tap MACs
                 + 2 * F2 * T * T                # pool1 matmul
                 + 2 * K3 * F2 * T               # conv3 tap MACs
                 + 2 * F2 * F2 * T               # pointwise conv4
                 + 2 * F2 * T1 * E)              # fused pool2+flatten+repr
    transcendentals = B * (F2 * 2 * T + F2 * T)  # ELU exps
    bytes_accessed = 4 * (xpad.size + slab.size + wrt.size + B * E)

    out3 = pl.pallas_call(
        brain_encoder_kernel,
        out_shape=jax.ShapeDtypeStruct((B, 1, E), jnp.float32),
        grid=(B,),
        in_specs=[
            pl.BlockSpec((C_EEG, 2 * T), lambda b: (b, 0)),       # per-sample EEG rows (8, 256)
            pl.BlockSpec((SLAB_R, SLAB_W), lambda b: (0, 0)),     # shared parameter slab
            pl.BlockSpec((F2 * T1, E), lambda b: (0, 0)),         # repacked repr weight
        ],
        out_specs=pl.BlockSpec((1, 1, E), lambda b: (b, 0, 0)),
        scratch_shapes=[pltpu.VMEM((1, F2 * T1), jnp.float32)],   # flatten staging row
        compiler_params=pltpu.CompilerParams(dimension_semantics=("parallel",)),
        cost_estimate=pl.CostEstimate(flops=flops,
                                      transcendentals=transcendentals,
                                      bytes_accessed=bytes_accessed),
    )(xpad, slab, wrt)
    # embedding.squeeze(dim=1) in the module is a no-op for E > 1; drop the helper dim here.
    return out3.reshape(B, E)


# --------------------------- raw (module-style) parameters ---------------------------
def init_params(key):
    ks = jax.random.split(key, 20)
    nrm = lambda k, shape, s: s * jax.random.normal(k, shape, jnp.float32)
    w1 = nrm(ks[0], (F1, K1), 0.3)          # conv1 temporal kernels
    w2 = nrm(ks[1], (F1, D, C_EEG), 0.3)    # conv2 depthwise spatial kernels
    w3 = nrm(ks[2], (F2, K3), 0.3)          # conv3 depthwise temporal kernels
    w4 = nrm(ks[3], (F2, F2), 0.3)          # conv4 pointwise kernels
    wr = nrm(ks[4], (E, FEAT), 0.1)         # repr_layer.weight
    br = nrm(ks[5], (E,), 0.1)              # repr_layer.bias

    def bn(ka, kb, kc, kd, n):              # eval-mode BatchNorm folded to scale/shift
        g = 0.5 + jax.random.uniform(ka, (n,), jnp.float32)
        beta = nrm(kb, (n,), 0.1)
        mean = nrm(kc, (n,), 0.1)
        var = 0.5 + jax.random.uniform(kd, (n,), jnp.float32)
        s = g / jnp.sqrt(var + EPS)
        return s, beta - mean * s

    s1, b1 = bn(ks[6], ks[7], ks[8], ks[9], F1)
    s2, b2 = bn(ks[10], ks[11], ks[12], ks[13], F2)
    s3, b3 = bn(ks[14], ks[15], ks[16], ks[17], F2)
    return dict(w1=w1, w2=w2, w3=w3, w4=w4, wr=wr, br=br,
                s1=s1, b1=b1, s2=s2, b2=b2, s3=s3, b3=b3)


# --------------------------- pure-JAX reference (f32, HIGHEST precision) ---------------------------
def toeplitz_bank(w, L):
    K = w.shape[1]
    pad = K // 2
    kidx = jnp.arange(L)[:, None] - jnp.arange(L)[None, :] + pad
    valid = (kidx >= 0) & (kidx < K)
    gathered = w[:, jnp.clip(kidx, 0, K - 1)]
    return jnp.where(valid[None], gathered, 0.0).astype(jnp.float32)


def reference_forward(x, raw):
    hp = dict(precision=lax.Precision.HIGHEST)
    a1 = toeplitz_bank(raw['w1'], T)
    a3 = toeplitz_bank(raw['w3'], T1)
    p1 = pool_matrix(T, P1)
    p2 = pool_matrix(T1, P2)
    x2 = x[:, 0]                                                        # (B, C, T)
    y1 = jnp.einsum('bct,ftu->bfcu', x2, a1, **hp)
    y1 = y1 * raw['s1'][None, :, None, None] + raw['b1'][None, :, None, None]
    y2 = jnp.einsum('fdc,bfcu->bfdu', raw['w2'], y1, **hp).reshape(x.shape[0], F2, T)
    y2 = _elu(y2 * raw['s2'][None, :, None] + raw['b2'][None, :, None])
    z1 = jnp.einsum('bru,uv->brv', y2, p1, **hp)
    y3 = jnp.einsum('brv,rvw->brw', z1, a3, **hp)
    y4 = jnp.einsum('or,brw->bow', raw['w4'], y3, **hp)
    y4 = _elu(y4 * raw['s3'][None, :, None] + raw['b3'][None, :, None])
    y5 = jnp.einsum('bow,wz->boz', y4, p2, **hp)                        # == 'model.do2'
    feat = y5.reshape(x.shape[0], FEAT)                                 # out.view(B, -1)
    return feat @ raw['wr'].T + raw['br'][None, :]                      # repr_layer


if __name__ == "__main__":
    key = jax.random.PRNGKey(0)
    kx, kp = jax.random.split(key)
    x = jax.random.normal(kx, (B, 1, C_EEG, T), jnp.float32)   # NCHW, like the PyTorch module
    raw = init_params(kp)

    out = jax.block_until_ready(brain_encoder_forward(x, raw))
    ref = reference_forward(x, raw)
    assert out.shape == (B, E), out.shape
    if not np.allclose(np.asarray(out), np.asarray(ref), atol=2e-2, rtol=2e-2):
        raise AssertionError("Pallas kernel output mismatch vs reference")
    print("KERNEL_OK")
</pallas_src>

<mosaic_0001>
module attributes {stable_mosaic.version = 11 : i64} {
  func.func @brain_encoder_kernel(%arg0: i32, %arg1: memref<8x256xf32, #tpu.memory_space<vmem>>, %arg2: memref<144x128xf32, #tpu.memory_space<vmem>>, %arg3: memref<512x32xf32, #tpu.memory_space<vmem>>, %arg4: memref<1x1x32xf32, #tpu.memory_space<vmem>>, %arg5: memref<1x512xf32, #tpu.memory_space<vmem>>) attributes {dimension_semantics = [#tpu.dimension_semantics<parallel>], iteration_bounds = array<i64: 2>, scalar_prefetch = 0 : i64, scratch_operands = 1 : i64, tpu.core_type = #tpu.core_type<tc>, window_params = [{transform_indices = @transform_0, window_bounds = array<i64: 8, 256>}, {pipeline_mode = #tpu.pipeline_mode<synchronous>, transform_indices = @transform_1, window_bounds = array<i64: 144, 128>}, {pipeline_mode = #tpu.pipeline_mode<synchronous>, transform_indices = @transform_2, window_bounds = array<i64: 512, 32>}, {transform_indices = @transform_3, window_bounds = array<i64: 1, 1, 32>}]} {
    %c0 = arith.constant 0 : index
    %c0_0 = arith.constant 0 : index
    %0 = vector.load %arg2[%c0, %c0_0] : memref<144x128xf32, #tpu.memory_space<vmem>>, vector<16x8xf32>
    %c0_1 = arith.constant 0 : index
    %c8 = arith.constant 8 : index
    %1 = vector.load %arg2[%c0_1, %c8] : memref<144x128xf32, #tpu.memory_space<vmem>>, vector<16x16xf32>
    %c0_2 = arith.constant 0 : index
    %c24 = arith.constant 24 : index
    %2 = vector.load %arg2[%c0_2, %c24] : memref<144x128xf32, #tpu.memory_space<vmem>>, vector<16x16xf32>
    %c0_3 = arith.constant 0 : index
    %c40 = arith.constant 40 : index
    %3 = vector.load %arg2[%c0_3, %c40] : memref<144x128xf32, #tpu.memory_space<vmem>>, vector<1x32xf32>
    %c16 = arith.constant 16 : index
    %c0_4 = arith.constant 0 : index
    %4 = vector.load %arg2[%c16, %c0_4] : memref<144x128xf32, #tpu.memory_space<vmem>>, vector<128x128xf32>
    %c0_5 = arith.constant 0 : index
    %c0_6 = arith.constant 0 : index
    %5 = vector.load %arg1[%c0_5, %c0_6] : memref<8x256xf32, #tpu.memory_space<vmem>>, vector<8x256xf32>
    %cst = arith.constant dense<0.000000e+00> : vector<16x256xf32>
    %6 = tpu.matmul %0, %5, %cst {dimension_numbers = #tpu.dot_dimension_numbers<[1], [0], [0], [1], [0, 0, 1, 1], [], []>} : vector<16x8xf32>, vector<8x256xf32>, vector<16x256xf32> -> vector<16x256xf32>
    %cst_7 = arith.constant 0.000000e+00 : f32
    %7 = vector.broadcast %cst_7 : f32 to vector<16x256xf32>
    %c3_i32 = arith.constant 3 : i32
    %8 = tpu.dynamic_rotate %6 by %c3_i32 dim 1 : vector<16x256xf32>, i32 -> vector<16x256xf32>
    %9 = vector.extract_strided_slice %1 {offsets = [0, 0], sizes = [16, 1], strides = [1, 1]} : vector<16x16xf32> to vector<16x1xf32>
    %10 = vector.broadcast %9 : vector<16x1xf32> to vector<16x256xf32>
    %11 = arith.mulf %10, %8 : vector<16x256xf32>
    %12 = arith.addf %7, %11 : vector<16x256xf32>
    %c2_i32 = arith.constant 2 : i32
    %13 = tpu.dynamic_rotate %6 by %c2_i32 dim 1 : vector<16x256xf32>, i32 -> vector<16x256xf32>
    %14 = vector.extract_strided_slice %1 {offsets = [0, 1], sizes = [16, 1], strides = [1, 1]} : vector<16x16xf32> to vector<16x1xf32>
    %15 = vector.broadcast %14 : vector<16x1xf32> to vector<16x256xf32>
    %16 = arith.mulf %15, %13 : vector<16x256xf32>
    %17 = arith.addf %12, %16 : vector<16x256xf32>
    %c1_i32 = arith.constant 1 : i32
    %18 = tpu.dynamic_rotate %6 by %c1_i32 dim 1 : vector<16x256xf32>, i32 -> vector<16x256xf32>
    %19 = vector.extract_strided_slice %1 {offsets = [0, 2], sizes = [16, 1], strides = [1, 1]} : vector<16x16xf32> to vector<16x1xf32>
    %20 = vector.broadcast %19 : vector<16x1xf32> to vector<16x256xf32>
    %21 = arith.mulf %20, %18 : vector<16x256xf32>
    %22 = arith.addf %17, %21 : vector<16x256xf32>
    %23 = vector.extract_strided_slice %1 {offsets = [0, 3], sizes = [16, 1], strides = [1, 1]} : vector<16x16xf32> to vector<16x1xf32>
    %24 = vector.broadcast %23 : vector<16x1xf32> to vector<16x256xf32>
    %25 = arith.mulf %24, %6 : vector<16x256xf32>
    %26 = arith.addf %22, %25 : vector<16x256xf32>
    %c255_i32 = arith.constant 255 : i32
    %27 = tpu.dynamic_rotate %6 by %c255_i32 dim 1 : vector<16x256xf32>, i32 -> vector<16x256xf32>
    %28 = vector.extract_strided_slice %1 {offsets = [0, 4], sizes = [16, 1], strides = [1, 1]} : vector<16x16xf32> to vector<16x1xf32>
    %29 = vector.broadcast %28 : vector<16x1xf32> to vector<16x256xf32>
    %30 = arith.mulf %29, %27 : vector<16x256xf32>
    %31 = arith.addf %26, %30 : vector<16x256xf32>
    %c254_i32 = arith.constant 254 : i32
    %32 = tpu.dynamic_rotate %6 by %c254_i32 dim 1 : vector<16x256xf32>, i32 -> vector<16x256xf32>
    %33 = vector.extract_strided_slice %1 {offsets = [0, 5], sizes = [16, 1], strides = [1, 1]} : vector<16x16xf32> to vector<16x1xf32>
    %34 = vector.broadcast %33 : vector<16x1xf32> to vector<16x256xf32>
    %35 = arith.mulf %34, %32 : vector<16x256xf32>
    %36 = arith.addf %31, %35 : vector<16x256xf32>
    %c253_i32 = arith.constant 253 : i32
    %37 = tpu.dynamic_rotate %6 by %c253_i32 dim 1 : vector<16x256xf32>, i32 -> vector<16x256xf32>
    %38 = vector.extract_strided_slice %1 {offsets = [0, 6], sizes = [16, 1], strides = [1, 1]} : vector<16x16xf32> to vector<16x1xf32>
    %39 = vector.broadcast %38 : vector<16x1xf32> to vector<16x256xf32>
    %40 = arith.mulf %39, %37 : vector<16x256xf32>
    %41 = arith.addf %36, %40 : vector<16x256xf32>
    %42 = vector.extract_strided_slice %1 {offsets = [0, 7], sizes = [16, 1], strides = [1, 1]} : vector<16x16xf32> to vector<16x1xf32>
    %43 = vector.broadcast %42 : vector<16x1xf32> to vector<16x256xf32>
    %44 = arith.addf %41, %43 : vector<16x256xf32>
    %cst_8 = arith.constant 0.000000e+00 : f32
    %45 = vector.broadcast %cst_8 : f32 to vector<16x256xf32>
    %46 = arith.cmpf ogt, %44, %45 : vector<16x256xf32>
    %cst_9 = arith.constant 0.000000e+00 : f32
    %47 = vector.broadcast %cst_9 : f32 to vector<16x256xf32>
    %48 = arith.minimumf %44, %47 : vector<16x256xf32>
    %49 = math.exp %48 : vector<16x256xf32>
    %cst_10 = arith.constant 1.000000e+00 : f32
    %50 = vector.broadcast %cst_10 : f32 to vector<16x256xf32>
    %51 = arith.subf %49, %50 : vector<16x256xf32>
    %52 = arith.select %46, %44, %51 : vector<16x256xi1>, vector<16x256xf32>
    %53 = vector.extract_strided_slice %52 {offsets = [0, 0], sizes = [16, 128], strides = [1, 1]} : vector<16x256xf32> to vector<16x128xf32>
    %cst_11 = arith.constant dense<0.000000e+00> : vector<16x128xf32>
    %54 = tpu.matmul %53, %4, %cst_11 {dimension_numbers = #tpu.dot_dimension_numbers<[1], [0], [0], [1], [0, 0, 1, 1], [], []>} : vector<16x128xf32>, vector<128x128xf32>, vector<16x128xf32> -> vector<16x128xf32>
    %cst_12 = arith.constant 0.000000e+00 : f32
    %55 = vector.broadcast %cst_12 : f32 to vector<16x128xf32>
    %c3_i32_13 = arith.constant 3 : i32
    %56 = tpu.dynamic_rotate %54 by %c3_i32_13 dim 1 : vector<16x128xf32>, i32 -> vector<16x128xf32>
    %57 = vector.extract_strided_slice %1 {offsets = [0, 8], sizes = [16, 1], strides = [1, 1]} : vector<16x16xf32> to vector<16x1xf32>
    %58 = vector.broadcast %57 : vector<16x1xf32> to vector<16x128xf32>
    %59 = arith.mulf %58, %56 : vector<16x128xf32>
    %60 = arith.addf %55, %59 : vector<16x128xf32>
    %c2_i32_14 = arith.constant 2 : i32
    %61 = tpu.dynamic_rotate %54 by %c2_i32_14 dim 1 : vector<16x128xf32>, i32 -> vector<16x128xf32>
    %62 = vector.extract_strided_slice %1 {offsets = [0, 9], sizes = [16, 1], strides = [1, 1]} : vector<16x16xf32> to vector<16x1xf32>
    %63 = vector.broadcast %62 : vector<16x1xf32> to vector<16x128xf32>
    %64 = arith.mulf %63, %61 : vector<16x128xf32>
    %65 = arith.addf %60, %64 : vector<16x128xf32>
    %c1_i32_15 = arith.constant 1 : i32
    %66 = tpu.dynamic_rotate %54 by %c1_i32_15 dim 1 : vector<16x128xf32>, i32 -> vector<16x128xf32>
    %67 = vector.extract_strided_slice %1 {offsets = [0, 10], sizes = [16, 1], strides = [1, 1]} : vector<16x16xf32> to vector<16x1xf32>
    %68 = vector.broadcast %67 : vector<16x1xf32> to vector<16x128xf32>
    %69 = arith.mulf %68, %66 : vector<16x128xf32>
    %70 = arith.addf %65, %69 : vector<16x128xf32>
    %71 = vector.extract_strided_slice %1 {offsets = [0, 11], sizes = [16, 1], strides = [1, 1]} : vector<16x16xf32> to vector<16x1xf32>
    %72 = vector.broadcast %71 : vector<16x1xf32> to vector<16x128xf32>
    %73 = arith.mulf %72, %54 : vector<16x128xf32>
    %74 = arith.addf %70, %73 : vector<16x128xf32>
    %c127_i32 = arith.constant 127 : i32
    %75 = tpu.dynamic_rotate %54 by %c127_i32 dim 1 : vector<16x128xf32>, i32 -> vector<16x128xf32>
    %76 = vector.extract_strided_slice %1 {offsets = [0, 12], sizes = [16, 1], strides = [1, 1]} : vector<16x16xf32> to vector<16x1xf32>
    %77 = vector.broadcast %76 : vector<16x1xf32> to vector<16x128xf32>
    %78 = arith.mulf %77, %75 : vector<16x128xf32>
    %79 = arith.addf %74, %78 : vector<16x128xf32>
    %c126_i32 = arith.constant 126 : i32
    %80 = tpu.dynamic_rotate %54 by %c126_i32 dim 1 : vector<16x128xf32>, i32 -> vector<16x128xf32>
    %81 = vector.extract_strided_slice %1 {offsets = [0, 13], sizes = [16, 1], strides = [1, 1]} : vector<16x16xf32> to vector<16x1xf32>
    %82 = vector.broadcast %81 : vector<16x1xf32> to vector<16x128xf32>
    %83 = arith.mulf %82, %80 : vector<16x128xf32>
    %84 = arith.addf %79, %83 : vector<16x128xf32>
    %c125_i32 = arith.constant 125 : i32
    %85 = tpu.dynamic_rotate %54 by %c125_i32 dim 1 : vector<16x128xf32>, i32 -> vector<16x128xf32>
    %86 = vector.extract_strided_slice %1 {offsets = [0, 14], sizes = [16, 1], strides = [1, 1]} : vector<16x16xf32> to vector<16x1xf32>
    %87 = vector.broadcast %86 : vector<16x1xf32> to vector<16x128xf32>
    %88 = arith.mulf %87, %85 : vector<16x128xf32>
    %89 = arith.addf %84, %88 : vector<16x128xf32>
    %90 = tpu.iota {dimensions = array<i32: 1>} : vector<16x128xi32>
    %c32_i32 = arith.constant 32 : i32
    %91 = vector.broadcast %c32_i32 : i32 to vector<16x128xi32>
    %92 = arith.cmpi slt, %90, %91 : vector<16x128xi32>
    %cst_16 = arith.constant 0.000000e+00 : f32
    %93 = vector.broadcast %cst_16 : f32 to vector<16x128xf32>
    %94 = arith.select %92, %89, %93 : vector<16x128xi1>, vector<16x128xf32>
    %cst_17 = arith.constant dense<0.000000e+00> : vector<16x128xf32>
    %95 = tpu.matmul %2, %94, %cst_17 {dimension_numbers = #tpu.dot_dimension_numbers<[1], [0], [0], [1], [0, 0, 1, 1], [], []>} : vector<16x16xf32>, vector<16x128xf32>, vector<16x128xf32> -> vector<16x128xf32>
    %96 = vector.extract_strided_slice %1 {offsets = [0, 15], sizes = [16, 1], strides = [1, 1]} : vector<16x16xf32> to vector<16x1xf32>
    %97 = vector.broadcast %96 : vector<16x1xf32> to vector<16x128xf32>
    %98 = arith.addf %95, %97 : vector<16x128xf32>
    %cst_18 = arith.constant 0.000000e+00 : f32
    %99 = vector.broadcast %cst_18 : f32 to vector<16x128xf32>
    %100 = arith.cmpf ogt, %98, %99 : vector<16x128xf32>
    %cst_19 = arith.constant 0.000000e+00 : f32
    %101 = vector.broadcast %cst_19 : f32 to vector<16x128xf32>
    %102 = arith.minimumf %98, %101 : vector<16x128xf32>
    %103 = math.exp %102 : vector<16x128xf32>
    %cst_20 = arith.constant 1.000000e+00 : f32
    %104 = vector.broadcast %cst_20 : f32 to vector<16x128xf32>
    %105 = arith.subf %103, %104 : vector<16x128xf32>
    %106 = arith.select %100, %98, %105 : vector<16x128xi1>, vector<16x128xf32>
    %107 = vector.extract_strided_slice %106 {offsets = [0, 0], sizes = [1, 32], strides = [1, 1]} : vector<16x128xf32> to vector<1x32xf32>
    %c0_21 = arith.constant 0 : index
    %c0_22 = arith.constant 0 : index
    %108 = vector.load %arg5[%c0_21, %c0_22] : memref<1x512xf32, #tpu.memory_space<vmem>>, vector<1x32xf32>
    tpu.vector_store %arg5[%c0_21, %c0_22], %107 {strides = array<i32>} : memref<1x512xf32, #tpu.memory_space<vmem>>, vector<1x32xf32>,
    %109 = vector.extract_strided_slice %106 {offsets = [1, 0], sizes = [1, 32], strides = [1, 1]} : vector<16x128xf32> to vector<1x32xf32>
    %c0_23 = arith.constant 0 : index
    %c32 = arith.constant 32 : index
    %110 = vector.load %arg5[%c0_23, %c32] : memref<1x512xf32, #tpu.memory_space<vmem>>, vector<1x32xf32>
    tpu.vector_store %arg5[%c0_23, %c32], %109 {strides = array<i32>} : memref<1x512xf32, #tpu.memory_space<vmem>>, vector<1x32xf32>,
    %111 = vector.extract_strided_slice %106 {offsets = [2, 0], sizes = [1, 32], strides = [1, 1]} : vector<16x128xf32> to vector<1x32xf32>
    %c0_24 = arith.constant 0 : index
    %c64 = arith.constant 64 : index
    %112 = vector.load %arg5[%c0_24, %c64] : memref<1x512xf32, #tpu.memory_space<vmem>>, vector<1x32xf32>
    tpu.vector_store %arg5[%c0_24, %c64], %111 {strides = array<i32>} : memref<1x512xf32, #tpu.memory_space<vmem>>, vector<1x32xf32>,
    %113 = vector.extract_strided_slice %106 {offsets = [3, 0], sizes = [1, 32], strides = [1, 1]} : vector<16x128xf32> to vector<1x32xf32>
    %c0_25 = arith.constant 0 : index
    %c96 = arith.constant 96 : index
    %114 = vector.load %arg5[%c0_25, %c96] : memref<1x512xf32, #tpu.memory_space<vmem>>, vector<1x32xf32>
    tpu.vector_store %arg5[%c0_25, %c96], %113 {strides = array<i32>} : memref<1x512xf32, #tpu.memory_space<vmem>>, vector<1x32xf32>,
    %115 = vector.extract_strided_slice %106 {offsets = [4, 0], sizes = [1, 32], strides = [1, 1]} : vector<16x128xf32> to vector<1x32xf32>
    %c0_26 = arith.constant 0 : index
    %c128 = arith.constant 128 : index
    %116 = vector.load %arg5[%c0_26, %c128] : memref<1x512xf32, #tpu.memory_space<vmem>>, vector<1x32xf32>
    tpu.vector_store %arg5[%c0_26, %c128], %115 {strides = array<i32>} : memref<1x512xf32, #tpu.memory_space<vmem>>, vector<1x32xf32>,
    %117 = vector.extract_strided_slice %106 {offsets = [5, 0], sizes = [1, 32], strides = [1, 1]} : vector<16x128xf32> to vector<1x32xf32>
    %c0_27 = arith.constant 0 : index
    %c160 = arith.constant 160 : index
    %118 = vector.load %arg5[%c0_27, %c160] : memref<1x512xf32, #tpu.memory_space<vmem>>, vector<1x32xf32>
    tpu.vector_store %arg5[%c0_27, %c160], %117 {strides = array<i32>} : memref<1x512xf32, #tpu.memory_space<vmem>>, vector<1x32xf32>,
    %119 = vector.extract_strided_slice %106 {offsets = [6, 0], sizes = [1, 32], strides = [1, 1]} : vector<16x128xf32> to vector<1x32xf32>
    %c0_28 = arith.constant 0 : index
    %c192 = arith.constant 192 : index
    %120 = vector.load %arg5[%c0_28, %c192] : memref<1x512xf32, #tpu.memory_space<vmem>>, vector<1x32xf32>
    tpu.vector_store %arg5[%c0_28, %c192], %119 {strides = array<i32>} : memref<1x512xf32, #tpu.memory_space<vmem>>, vector<1x32xf32>,
    %121 = vector.extract_strided_slice %106 {offsets = [7, 0], sizes = [1, 32], strides = [1, 1]} : vector<16x128xf32> to vector<1x32xf32>
    %c0_29 = arith.constant 0 : index
    %c224 = arith.constant 224 : index
    %122 = vector.load %arg5[%c0_29, %c224] : memref<1x512xf32, #tpu.memory_space<vmem>>, vector<1x32xf32>
    tpu.vector_store %arg5[%c0_29, %c224], %121 {strides = array<i32>} : memref<1x512xf32, #tpu.memory_space<vmem>>, vector<1x32xf32>,
    %123 = vector.extract_strided_slice %106 {offsets = [8, 0], sizes = [1, 32], strides = [1, 1]} : vector<16x128xf32> to vector<1x32xf32>
    %c0_30 = arith.constant 0 : index
    %c256 = arith.constant 256 : index
    %124 = vector.load %arg5[%c0_30, %c256] : memref<1x512xf32, #tpu.memory_space<vmem>>, vector<1x32xf32>
    tpu.vector_store %arg5[%c0_30, %c256], %123 {strides = array<i32>} : memref<1x512xf32, #tpu.memory_space<vmem>>, vector<1x32xf32>,
    %125 = vector.extract_strided_slice %106 {offsets = [9, 0], sizes = [1, 32], strides = [1, 1]} : vector<16x128xf32> to vector<1x32xf32>
    %c0_31 = arith.constant 0 : index
    %c288 = arith.constant 288 : index
    %126 = vector.load %arg5[%c0_31, %c288] : memref<1x512xf32, #tpu.memory_space<vmem>>, vector<1x32xf32>
    tpu.vector_store %arg5[%c0_31, %c288], %125 {strides = array<i32>} : memref<1x512xf32, #tpu.memory_space<vmem>>, vector<1x32xf32>,
    %127 = vector.extract_strided_slice %106 {offsets = [10, 0], sizes = [1, 32], strides = [1, 1]} : vector<16x128xf32> to vector<1x32xf32>
    %c0_32 = arith.constant 0 : index
    %c320 = arith.constant 320 : index
    %128 = vector.load %arg5[%c0_32, %c320] : memref<1x512xf32, #tpu.memory_space<vmem>>, vector<1x32xf32>
    tpu.vector_store %arg5[%c0_32, %c320], %127 {strides = array<i32>} : memref<1x512xf32, #tpu.memory_space<vmem>>, vector<1x32xf32>,
    %129 = vector.extract_strided_slice %106 {offsets = [11, 0], sizes = [1, 32], strides = [1, 1]} : vector<16x128xf32> to vector<1x32xf32>
    %c0_33 = arith.constant 0 : index
    %c352 = arith.constant 352 : index
    %130 = vector.load %arg5[%c0_33, %c352] : memref<1x512xf32, #tpu.memory_space<vmem>>, vector<1x32xf32>
    tpu.vector_store %arg5[%c0_33, %c352], %129 {strides = array<i32>} : memref<1x512xf32, #tpu.memory_space<vmem>>, vector<1x32xf32>,
    %131 = vector.extract_strided_slice %106 {offsets = [12, 0], sizes = [1, 32], strides = [1, 1]} : vector<16x128xf32> to vector<1x32xf32>
    %c0_34 = arith.constant 0 : index
    %c384 = arith.constant 384 : index
    %132 = vector.load %arg5[%c0_34, %c384] : memref<1x512xf32, #tpu.memory_space<vmem>>, vector<1x32xf32>
    tpu.vector_store %arg5[%c0_34, %c384], %131 {strides = array<i32>} : memref<1x512xf32, #tpu.memory_space<vmem>>, vector<1x32xf32>,
    %133 = vector.extract_strided_slice %106 {offsets = [13, 0], sizes = [1, 32], strides = [1, 1]} : vector<16x128xf32> to vector<1x32xf32>
    %c0_35 = arith.constant 0 : index
    %c416 = arith.constant 416 : index
    %134 = vector.load %arg5[%c0_35, %c416] : memref<1x512xf32, #tpu.memory_space<vmem>>, vector<1x32xf32>
    tpu.vector_store %arg5[%c0_35, %c416], %133 {strides = array<i32>} : memref<1x512xf32, #tpu.memory_space<vmem>>, vector<1x32xf32>,
    %135 = vector.extract_strided_slice %106 {offsets = [14, 0], sizes = [1, 32], strides = [1, 1]} : vector<16x128xf32> to vector<1x32xf32>
    %c0_36 = arith.constant 0 : index
    %c448 = arith.constant 448 : index
    %136 = vector.load %arg5[%c0_36, %c448] : memref<1x512xf32, #tpu.memory_space<vmem>>, vector<1x32xf32>
    tpu.vector_store %arg5[%c0_36, %c448], %135 {strides = array<i32>} : memref<1x512xf32, #tpu.memory_space<vmem>>, vector<1x32xf32>,
    %137 = vector.extract_strided_slice %106 {offsets = [15, 0], sizes = [1, 32], strides = [1, 1]} : vector<16x128xf32> to vector<1x32xf32>
    %c0_37 = arith.constant 0 : index
    %c480 = arith.constant 480 : index
    %138 = vector.load %arg5[%c0_37, %c480] : memref<1x512xf32, #tpu.memory_space<vmem>>, vector<1x32xf32>
    tpu.vector_store %arg5[%c0_37, %c480], %137 {strides = array<i32>} : memref<1x512xf32, #tpu.memory_space<vmem>>, vector<1x32xf32>,
    %c0_38 = arith.constant 0 : index
    %c0_39 = arith.constant 0 : index
    %139 = vector.load %arg5[%c0_38, %c0_39] : memref<1x512xf32, #tpu.memory_space<vmem>>, vector<1x512xf32>
    %c0_40 = arith.constant 0 : index
    %c0_41 = arith.constant 0 : index
    %140 = vector.load %arg3[%c0_40, %c0_41] : memref<512x32xf32, #tpu.memory_space<vmem>>, vector<512x32xf32>
    %cst_42 = arith.constant dense<0.000000e+00> : vector<1x32xf32>
    %141 = tpu.matmul %139, %140, %cst_42 {dimension_numbers = #tpu.dot_dimension_numbers<[1], [0], [0], [1], [0, 0, 1, 1], [], []>} : vector<1x512xf32>, vector<512x32xf32>, vector<1x32xf32> -> vector<1x32xf32>
    %142 = arith.addf %141, %3 : vector<1x32xf32>
    %c0_43 = arith.constant 0 : index
    %c0_44 = arith.constant 0 : index
    %c0_45 = arith.constant 0 : index
    %143 = vector.load %arg4[%c0_43, %c0_44, %c0_45] : memref<1x1x32xf32, #tpu.memory_space<vmem>>, vector<1x1x32xf32>
    %144 = vector.shape_cast %143 : vector<1x1x32xf32> to vector<1x32xf32>
    %145 = vector.shape_cast %142 : vector<1x32xf32> to vector<1x1x32xf32>
    tpu.vector_store %arg4[%c0_43, %c0_44, %c0_45], %145 {strides = array<i32>} : memref<1x1x32xf32, #tpu.memory_space<vmem>>, vector<1x1x32xf32>,
    return
  }
  func.func @transform_0(%arg0: i32) -> (i32, i32) {
    %c0_i32 = arith.constant 0 : i32
    %c0_i32_0 = arith.constant 0 : i32
    return %arg0, %c0_i32 : i32, i32
  }
  func.func @transform_1(%arg0: i32) -> (i32, i32) {
    %c0_i32 = arith.constant 0 : i32
    %c0_i32_0 = arith.constant 0 : i32
    %c0_i32_1 = arith.constant 0 : i32
    return %c0_i32, %c0_i32_0 : i32, i32
  }
  func.func @transform_2(%arg0: i32) -> (i32, i32) {
    %c0_i32 = arith.constant 0 : i32
    %c0_i32_0 = arith.constant 0 : i32
    %c0_i32_1 = arith.constant 0 : i32
    return %c0_i32, %c0_i32_0 : i32, i32
  }
  func.func @transform_3(%arg0: i32) -> (i32, i32, i32) {
    %c0_i32 = arith.constant 0 : i32
    %c0_i32_0 = arith.constant 0 : i32
    %c0_i32_1 = arith.constant 0 : i32
    return %arg0, %c0_i32, %c0_i32_0 : i32, i32, i32
  }
}

</mosaic_0001>

<llo_original>
// kernel: tpu_custom_call.1
$region0: #{tpu_custom_call.1}
  #allocation0 [shape = 'u32[]', space=smem, size = 0x4, offset = 0x4, fixed_abs, tag = 'smem constant byte address 0x4 - core index']
  #allocation1 [shape = 'u32[72,128]{1,0:T(1,128)}', space=vmem, size = 0x9000, scoped, tag = 'internal scratch']
  #allocation2 [shape = 'f32[1,512]{1,0:T(1,128)}', space=vmem, size = 0x800, scoped, tag = 'scratch operand']
  %s0 = inlined_call_operand.vmem [shape: f32[16,256], index: 0, kind: input, shape index: {}]
  %s1 = inlined_call_operand.vmem [shape: f32[144,128], index: 1, kind: input, shape index: {}]
  %s2 = inlined_call_operand.vmem [shape: f32[512,32], index: 2, kind: input, shape index: {}]
  %s3 = inlined_call_operand.hbm [shape: f32[2,1,32], index: 3, kind: output, shape index: {}]
  %s4 = sld [smem:[#allocation0]]
  $region45: #{tpu_custom_call.1} parent=0
    _
  %s6 = ssub.s32 1, %s4
  %s7 = scalar_select 0, %s6, %s4
  $region1: #{tpu_custom_call.1} parent=0
    #allocation3 [shape = 'u8[1024]{0}', space=vmem, size = 0x400, scoped, tag = 'output window, operand 0']
    #allocation4 [shape = 's32[2]{0}', space=sflag, size = 0x8, scoped, tag = 'scoped memory for tpu_custom_call.1']
    %8 = vsyncpa [#allocation4], 0
    %s9 = scalar_lea.sflag [#allocation4], 1
    %10 = vsyncpa %s9, 0
    loop: start=0, step=1, limit=4
    $region2: #{tpu_custom_call.1} parent=1 // loop_pre_header
      _
    $region3: #{tpu_custom_call.1} parent=1 // loop_header
      %s12 = sphi 0, %s16
      %p13 = scmp.ge.s32.totalorder %s12, 4
      %s22 = sphi 0, %s24
      %s25 = sphi 0, %s22
      %s26 = sphi 0, %s25
      %s42 = sphi 0, %s26
      %s46 = sphi 0, %s46
      %s48 = sphi 0, %s46
      %s49 = sphi 0, %s48
      %s63 = sphi 0, %s49
      %s67 = sphi 0, %s67
      %s69 = sphi 0, %s67
      %s70 = sphi 0, %s69
      %s84 = sphi 0, %s70
      %s90 = sphi 0, %s92
      %s93 = sphi 0, %s90
      %s94 = sphi 0, %s93
      %s110 = sphi 0, %s94
    $region4: #{tpu_custom_call.1} parent=1 // loop_header_branch
      %15 = sbr.rel (%p13) target = $region8
    $region5: #{tpu_custom_call.1} parent=1 // loop_body
      %s17 = ssub.s32 %s12, 1
      %s18 = ssub.s32 %s12, 2
      %s19 = sadd.s32 %s12, 1
      %s20 = ssub.s32 %s12, %s19
      %p21 = scmp.eq.s32.totalorder %s20, 0
      %s23 = sadd.s32 %s22, 1
      %s24 = scalar_select %p21, %s22, %s23
      %p27 = pneg %p21
      %p28 = scmp.eq.s32.totalorder %s12, 1
      %p29 = por %p27, %p28
      %p30 = scmp.ne.s32.totalorder %s22, %s25
      %p31 = scmp.eq.s32.totalorder %s12, 0
      %p32 = por %p30, %p31
      %p33 = scmp.ne.s32.totalorder %s22, %s25
      %p34 = scmp.eq.s32.totalorder %s17, 1
      %p35 = por %p33, %p34
      %p36 = scmp.ne.s32.totalorder %s25, %s26
      %p37 = scmp.eq.s32.totalorder %s17, 0
      %p38 = por %p36, %p37
      %p39 = scmp.ne.s32.totalorder %s25, %s26
      %p40 = scmp.eq.s32.totalorder %s18, 1
      %p41 = por %p39, %p40
      %p43 = scmp.ne.s32.totalorder %s26, %s42
      %p44 = scmp.eq.s32.totalorder %s18, 0
      %p45 = por %p43, %p44
      %s47 = sadd.s32 %s46, 1
      %p50 = scmp.eq.s32.totalorder %s12, 1
      %p51 = scmp.ne.s32.totalorder %s46, %s48
      %p52 = scmp.eq.s32.totalorder %s12, 0
      %p53 = por %p51, %p52
      %p54 = scmp.ne.s32.totalorder %s46, %s48
      %p55 = scmp.eq.s32.totalorder %s17, 1
      %p56 = por %p54, %p55
      %p57 = scmp.ne.s32.totalorder %s48, %s49
      %p58 = scmp.eq.s32.totalorder %s17, 0
      %p59 = por %p57, %p58
      %p60 = scmp.ne.s32.totalorder %s48, %s49
      %p61 = scmp.eq.s32.totalorder %s18, 1
      %p62 = por %p60, %p61
      %p64 = scmp.ne.s32.totalorder %s49, %s63
      %p65 = scmp.eq.s32.totalorder %s18, 0
      %p66 = por %p64, %p65
      %s68 = sadd.s32 %s67, 1
      %p71 = scmp.eq.s32.totalorder %s12, 1
      %p72 = scmp.ne.s32.totalorder %s67, %s69
      %p73 = scmp.eq.s32.totalorder %s12, 0
      %p74 = por %p72, %p73
      %p75 = scmp.ne.s32.totalorder %s67, %s69
      %p76 = scmp.eq.s32.totalorder %s17, 1
      %p77 = por %p75, %p76
      %p78 = scmp.ne.s32.totalorder %s69, %s70
      %p79 = scmp.eq.s32.totalorder %s17, 0
      %p80 = por %p78, %p79
      %p81 = scmp.ne.s32.totalorder %s69, %s70
      %p82 = scmp.eq.s32.totalorder %s18, 1
      %p83 = por %p81, %p82
      %p85 = scmp.ne.s32.totalorder %s70, %s84
      %p86 = scmp.eq.s32.totalorder %s18, 0
      %p87 = por %p85, %p86
      %s88 = ssub.s32 %s12, %s19
      %p89 = scmp.eq.s32.totalorder %s88, 0
      %s91 = sadd.s32 %s90, 1
      %s92 = scalar_select %p89, %s90, %s91
      %p95 = pneg %p89
      %p96 = scmp.eq.s32.totalorder %s12, 1
      %p97 = por %p95, %p96
      %p98 = scmp.ne.s32.totalorder %s90, %s93
      %p99 = scmp.eq.s32.totalorder %s12, 0
      %p100 = por %p98, %p99
      %p101 = scmp.ne.s32.totalorder %s90, %s93
      %p102 = scmp.eq.s32.totalorder %s17, 1
      %p103 = por %p101, %p102
      %p104 = scmp.ne.s32.totalorder %s93, %s94
      %p105 = scmp.eq.s32.totalorder %s17, 0
      %p106 = por %p104, %p105
      %p107 = scmp.ne.s32.totalorder %s93, %s94
      %p108 = scmp.eq.s32.totalorder %s18, 1
      %p109 = por %p107, %p108
      %p111 = scmp.ne.s32.totalorder %s94, %s110
      %p112 = scmp.eq.s32.totalorder %s18, 0
      %p113 = por %p111, %p112
      %p114 = scmp.le.s32.totalorder 1, %s12
      %p115 = scmp.lt.s32.totalorder %s12, 3
      %p116 = pnand %p114, %p115
      %p117 = pneg %p116
      // Predicated region
      $region9: #{tpu_custom_call.1} parent=5 // pred_check
        _
      $region10: #{tpu_custom_call.1} parent=5 // pred_check_branch
        %119 = sbr.rel (%p116) target = $region12
      $region11: #{tpu_custom_call.1} parent=5 // pred_region
        %s120 = ssub.s32 %s12, 1
        // Predicated region
        $region13: #{tpu_custom_call.1} parent=11 // pred_check
          %p121 = pneg %p59
        $region14: #{tpu_custom_call.1} parent=11 // pred_check_branch
          %123 = sbr.rel (%p121) target = $region16
        $region15: #{tpu_custom_call.1} parent=11 // pred_region
          _
        $region16: #{tpu_custom_call.1} parent=11 // pred_fallthru
          _
        // Predicated region
        $region17: #{tpu_custom_call.1} parent=11 // pred_check
          %p124 = pneg %p80
        $region18: #{tpu_custom_call.1} parent=11 // pred_check_branch
          %126 = sbr.rel (%p124) target = $region20
        $region19: #{tpu_custom_call.1} parent=11 // pred_region
          _
        $region20: #{tpu_custom_call.1} parent=11 // pred_fallthru
          _
      $region12: #{tpu_custom_call.1} parent=5 // pred_fallthru
        _
      %p127 = scmp.lt.s32.totalorder %s12, 2
      // Predicated region
      $region21: #{tpu_custom_call.1} parent=5 // pred_check
        %p128 = pneg %p127
      $region22: #{tpu_custom_call.1} parent=5 // pred_check_branch
        %130 = sbr.rel (%p128) target = $region24
      $region23: #{tpu_custom_call.1} parent=5 // pred_region
        // Predicated region
        $region25: #{tpu_custom_call.1} parent=23 // pred_check
          %p131 = pneg %p32
        $region26: #{tpu_custom_call.1} parent=23 // pred_check_branch
          %133 = sbr.rel (%p131) target = $region28
        $region27: #{tpu_custom_call.1} parent=23 // pred_region
          %p134 = scmp.lt.s32.totalorder %s12, 1
          %s135 = scalar_select %p134, %s12, 1
          %s136 = smul.addr %s135, 2
          %s137 = smul.addr %s136, 8
          %s138 = scalar_lea.vmem %s0, %s137
        $region28: #{tpu_custom_call.1} parent=23 // pred_fallthru
          _
      $region24: #{tpu_custom_call.1} parent=5 // pred_fallthru
        _
      %p139 = scmp.le.s32.totalorder 1, %s12
      %p140 = scmp.lt.s32.totalorder %s12, 3
      %p141 = pnand %p139, %p140
      %p142 = pneg %p141
      // Predicated region
      $region29: #{tpu_custom_call.1} parent=5 // pred_check
        _
      $region30: #{tpu_custom_call.1} parent=5 // pred_check_branch
        %144 = sbr.rel (%p141) target = $region32
      $region31: #{tpu_custom_call.1} parent=5 // pred_region
        %s145 = ssub.s32 %s12, 1
        %p146 = scmp.lt.s32.totalorder %s17, 1
        %s147 = scalar_select %p146, %s17, 1
        %s148 = smul.addr %s147, 2
        %s149 = smul.addr %s148, 8
        %s150 = scalar_lea.vmem %s0, %s149
        %p151 = pneg %p38
        %p152 = pneg %p35
        %p153 = pneg %p59
        %p154 = pneg %p56
        %p155 = pneg %p80
        %p156 = pneg %p77
        %p157 = pneg %p106
        %p158 = pneg %p103
        %s159 = sand.u32 %s93, 1
        %s160 = scalar_lea.sflag [#allocation4], %s159
        %s161 = sand.u32 %s93, 1
        %s162 = scalar_lea.vmem [#allocation3], %s161
        %p163 = scmp.lt.s32.totalorder %s17, 1
        %s164 = scalar_select %p163, %s17, 1
        %s165 = smul.addr %s164, 2
        %s166 = smul.addr %s165, 8
        %s167 = scalar_lea.vmem %s0, %s166
        %v168 = vld [vmem:[%s1] sm:$0xff]
        %v169 = vld [vmem:[%s1 + $0x8] sm:$0xff]
        %v170 = vld [vmem:[%s1] sm:$0x1]
        %v171 = vld [vmem:[%s1 + $0x10] sm:$0xff]
        %v172 = vld [vmem:[%s1 + $0x18] sm:$0xff]
        %v173 = vld [vmem:[%s1 + $0x20] sm:$0xff]
        %v174 = vld [vmem:[%s1 + $0x28] sm:$0xff]
        %v175 = vld [vmem:[%s1 + $0x30] sm:$0xff]
        %v176 = vld [vmem:[%s1 + $0x38] sm:$0xff]
        %v177 = vld [vmem:[%s1 + $0x40] sm:$0xff]
        %v178 = vld [vmem:[%s1 + $0x48] sm:$0xff]
        %v179 = vld [vmem:[%s1 + $0x50] sm:$0xff]
        %v180 = vld [vmem:[%s1 + $0x58] sm:$0xff]
        %v181 = vld [vmem:[%s1 + $0x60] sm:$0xff]
        %v182 = vld [vmem:[%s1 + $0x68] sm:$0xff]
        %v183 = vld [vmem:[%s1 + $0x70] sm:$0xff]
        %v184 = vld [vmem:[%s1 + $0x78] sm:$0xff]
        %v185 = vld [vmem:[%s1 + $0x80] sm:$0xff]
        %v186 = vld [vmem:[%s1 + $0x88] sm:$0xff]
        %v187 = vld [vmem:[%s167] sm:$0xff]
        %v188 = vld [vmem:[%s167 + $0x8] sm:$0xff]
        %vm189 = vcmask 64512
        %v191 = vsel %vm189, %v168, 0
        %v194 = vsel %vm189, %v169, 0
        %196 = vmatpush.msra.mxu0 0.0
        %197 = vmatpush.msra.mxu0 0.0
        %198 = vmatpush.msra.mxu0 0.0
        %199 = vmatpush.msra.mxu0 0.0
        %200 = vmatpush.msra.mxu0 0.0
        %201 = vmatpush.msra.mxu0 0.0
        %202 = vmatpush.msra.mxu0 0.0
        %203 = vmatpush.msra.mxu0 0.0
        %204 = vmatpush.msra.mxu0 0.0
        %205 = vmatpush.msra.mxu0 0.0
        %206 = vmatpush.msra.mxu0 0.0
        %207 = vmatpush.msra.mxu0 0.0
        %208 = vmatpush.msra.mxu0 0.0
        %209 = vmatpush.msra.mxu0 0.0
        %210 = vmatpush.msra.mxu0 0.0
        %211 = vmatpush.msra.mxu0 %v187
        %212 = vmatmul.f32.gmra.mxu0 %v191
        %v213 = vpop.f32.mrf.mxu0
        %v214 = vadd.f32 0.0, %v213
        %215 = vmatmul.f32.gmra.mxu0 %v194
        %v216 = vpop.f32.mrf.mxu0
        %v217 = vadd.f32 0.0, %v216
        %218 = vdwg.mxu0
        %219 = vmatpush.msra.mxu0 0.0
        %220 = vmatpush.msra.mxu0 0.0
        %221 = vmatpush.msra.mxu0 0.0
        %222 = vmatpush.msra.mxu0 0.0
        %223 = vmatpush.msra.mxu0 0.0
        %224 = vmatpush.msra.mxu0 0.0
        %225 = vmatpush.msra.mxu0 0.0
        %226 = vmatpush.msra.mxu0 0.0
        %227 = vmatpush.msra.mxu0 0.0
        %228 = vmatpush.msra.mxu0 0.0
        %229 = vmatpush.msra.mxu0 0.0
        %230 = vmatpush.msra.mxu0 0.0
        %231 = vmatpush.msra.mxu0 0.0
        %232 = vmatpush.msra.mxu0 0.0
        %233 = vmatpush.msra.mxu0 0.0
        %234 = vmatpush.msra.mxu0 %v188
        %235 = vmatmul.f32.gmra.mxu0 %v191
        %v236 = vpop.f32.mrf.mxu0
        %v237 = vadd.f32 0.0, %v236
        %238 = vmatmul.f32.gmra.mxu0 %v194
        %v239 = vpop.f32.mrf.mxu0
        %v240 = vadd.f32 0.0, %v239
        %241 = vdwg.mxu0
        %242 = vrot.lane.b32.xlu0 %v214, 3
        %v243 = vpop.permute.xlu0 %242
        %244 = vrot.lane.b32.xlu0 %v217, 3
        %v245 = vpop.permute.xlu0 %244
        %246 = vrot.lane.b32.xlu0 %v237, 3
        %v247 = vpop.permute.xlu0 %246
        %248 = vrot.lane.b32.xlu0 %v240, 3
        %v249 = vpop.permute.xlu0 %248
        %v250 = vlaneseq
        %v251 = vand.u32 %v250, 127
        %vm252 = vcmp.lt.s32.totalorder %v251, 3
        %v253 = vsel %vm252, %v247, %v243
        %v254 = vsel %vm252, %v249, %v245
        %255 = vset.pattern.permute.xlu0 8
        %256 = vperm.xlu0 %255, %v168
        %v257 = vpop.permute.xlu0 %256
        %259 = vset.pattern.permute.xlu0 8
        %260 = vperm.xlu0 %259, %v169
        %v261 = vpop.permute.xlu0 %260
        %v263 = vmul.f32 %v257, %v253
        %v264 = vmul.f32 %v261, %v254
        %v265 = vadd.f32 %v263, 0.0
        %v266 = vadd.f32 %v264, 0.0
        %267 = vrot.lane.b32.xlu0 %v214, 2
        %v268 = vpop.permute.xlu0 %267
        %269 = vrot.lane.b32.xlu0 %v217, 2
        %v270 = vpop.permute.xlu0 %269
        %271 = vrot.lane.b32.xlu0 %v237, 2
        %v272 = vpop.permute.xlu0 %271
        %273 = vrot.lane.b32.xlu0 %v240, 2
        %v274 = vpop.permute.xlu0 %273
        %vm275 = vcmp.lt.s32.totalorder %v251, 2
        %v276 = vsel %vm275, %v272, %v268
        %v277 = vsel %vm275, %v274, %v270
        %278 = vset.pattern.permute.xlu0 9
        %279 = vperm.xlu0 %278, %v168
        %v280 = vpop.permute.xlu0 %279
        %282 = vset.pattern.permute.xlu0 9
        %283 = vperm.xlu0 %282, %v169
        %v284 = vpop.permute.xlu0 %283
        %v286 = vmul.f32 %v280, %v276
        %v287 = vmul.f32 %v284, %v277
        %v288 = vadd.f32 %v265, %v286
        %v289 = vadd.f32 %v266, %v287
        %290 = vrot.lane.b32.xlu0 %v214, 1
        %v291 = vpop.permute.xlu0 %290
        %292 = vrot.lane.b32.xlu0 %v217, 1
        %v293 = vpop.permute.xlu0 %292
        %294 = vrot.lane.b32.xlu0 %v237, 1
        %v295 = vpop.permute.xlu0 %294
        %296 = vrot.lane.b32.xlu0 %v240, 1
        %v297 = vpop.permute.xlu0 %296
        %vm298 = vcmp.lt.s32.totalorder %v251, 1
        %v299 = vsel %vm298, %v295, %v291
        %v300 = vsel %vm298, %v297, %v293
        %301 = vset.pattern.permute.xlu0 10
        %302 = vperm.xlu0 %301, %v168
        %v303 = vpop.permute.xlu0 %302
        %305 = vset.pattern.permute.xlu0 10
        %306 = vperm.xlu0 %305, %v169
        %v307 = vpop.permute.xlu0 %306
        %v309 = vmul.f32 %v303, %v299
        %v310 = vmul.f32 %v307, %v300
        %v311 = vadd.f32 %v288, %v309
        %v312 = vadd.f32 %v289, %v310
        %313 = vset.pattern.permute.xlu0 11
        %314 = vperm.xlu0 %313, %v168
        %v315 = vpop.permute.xlu0 %314
        %317 = vset.pattern.permute.xlu0 11
        %318 = vperm.xlu0 %317, %v169
        %v319 = vpop.permute.xlu0 %318
        %v321 = vmul.f32 %v315, %v214
        %v322 = vmul.f32 %v319, %v217
        %v323 = vadd.f32 %v311, %v321
        %v324 = vadd.f32 %v312, %v322
        %325 = vrot.lane.b32.xlu0 %v214, 127
        %v326 = vpop.permute.xlu0 %325
        %327 = vrot.lane.b32.xlu0 %v217, 127
        %v328 = vpop.permute.xlu0 %327
        %329 = vrot.lane.b32.xlu0 %v237, 127
        %v330 = vpop.permute.xlu0 %329
        %331 = vrot.lane.b32.xlu0 %v240, 127
        %v332 = vpop.permute.xlu0 %331
        %vm333 = vcmp.lt.s32.totalorder %v251, 127
        %v334 = vsel %vm333, %v326, %v330
        %v335 = vsel %vm333, %v328, %v332
        %336 = vset.pattern.permute.xlu0 12
        %337 = vperm.xlu0 %336, %v168
        %v338 = vpop.permute.xlu0 %337
        %340 = vset.pattern.permute.xlu0 12
        %341 = vperm.xlu0 %340, %v169
        %v342 = vpop.permute.xlu0 %341
        %v344 = vmul.f32 %v338, %v334
        %v345 = vmul.f32 %v342, %v335
        %v346 = vadd.f32 %v323, %v344
        %v347 = vadd.f32 %v324, %v345
        %348 = vrot.lane.b32.xlu0 %v214, 126
        %v349 = vpop.permute.xlu0 %348
        %350 = vrot.lane.b32.xlu0 %v217, 126
        %v351 = vpop.permute.xlu0 %350
        %352 = vrot.lane.b32.xlu0 %v237, 126
        %v353 = vpop.permute.xlu0 %352
        %354 = vrot.lane.b32.xlu0 %v240, 126
        %v355 = vpop.permute.xlu0 %354
        %vm356 = vcmp.lt.s32.totalorder %v251, 126
        %v357 = vsel %vm356, %v349, %v353
        %v358 = vsel %vm356, %v351, %v355
        %359 = vset.pattern.permute.xlu0 13
        %360 = vperm.xlu0 %359, %v168
        %v361 = vpop.permute.xlu0 %360
        %363 = vset.pattern.permute.xlu0 13
        %364 = vperm.xlu0 %363, %v169
        %v365 = vpop.permute.xlu0 %364
        %v367 = vmul.f32 %v361, %v357
        %v368 = vmul.f32 %v365, %v358
        %v369 = vadd.f32 %v346, %v367
        %v370 = vadd.f32 %v347, %v368
        %371 = vrot.lane.b32.xlu0 %v214, 125
        %v372 = vpop.permute.xlu0 %371
        %373 = vrot.lane.b32.xlu0 %v217, 125
        %v374 = vpop.permute.xlu0 %373
        %375 = vrot.lane.b32.xlu0 %v237, 125
        %v376 = vpop.permute.xlu0 %375
        %377 = vrot.lane.b32.xlu0 %v240, 125
        %v378 = vpop.permute.xlu0 %377
        %vm379 = vcmp.lt.s32.totalorder %v251, 125
        %v380 = vsel %vm379, %v372, %v376
        %v381 = vsel %vm379, %v374, %v378
        %382 = vset.pattern.permute.xlu0 14
        %383 = vperm.xlu0 %382, %v168
        %v384 = vpop.permute.xlu0 %383
        %386 = vset.pattern.permute.xlu0 14
        %387 = vperm.xlu0 %386, %v169
        %v388 = vpop.permute.xlu0 %387
        %v390 = vmul.f32 %v384, %v380
        %v391 = vmul.f32 %v388, %v381
        %v392 = vadd.f32 %v369, %v390
        %v393 = vadd.f32 %v370, %v391
        %394 = vset.pattern.permute.xlu0 15
        %395 = vperm.xlu0 %394, %v168
        %v396 = vpop.permute.xlu0 %395
        %398 = vset.pattern.permute.xlu0 15
        %399 = vperm.xlu0 %398, %v169
        %v400 = vpop.permute.xlu0 %399
        %v402 = vadd.f32 %v392, %v396
        %v403 = vadd.f32 %v393, %v400
        %vm404 = vcmp.gt.f32.partialorder %v402, 0.0
        %vm405 = vcmp.gt.f32.partialorder %v403, 0.0
        %v406 = vmin.f32 %v402, 0.0
        %v407 = vmin.f32 %v403, 0.0
        %v408 = vmul.f32 %v406, 1.442695
        %v409 = vpow.pop %v408
        %v410 = vmul.f32 %v407, 1.442695
        %v411 = vpow.pop %v410
        %v412 = vsub.f32 %v409, 1.0
        %v413 = vsub.f32 %v411, 1.0
        %v414 = vsel %vm404, %v402, %v412
        %v415 = vsel %vm405, %v403, %v413
        %416 = vmatpush.msra.mxu0 %v186
        %417 = vmatpush.msra.mxu0 %v185
        %418 = vmatpush.msra.mxu0 %v184
        %419 = vmatpush.msra.mxu0 %v183
        %420 = vmatpush.msra.mxu0 %v182
        %421 = vmatpush.msra.mxu0 %v181
        %422 = vmatpush.msra.mxu0 %v180
        %423 = vmatpush.msra.mxu0 %v179
        %424 = vmatpush.msra.mxu0 %v178
        %425 = vmatpush.msra.mxu0 %v177
        %426 = vmatpush.msra.mxu0 %v176
        %427 = vmatpush.msra.mxu0 %v175
        %428 = vmatpush.msra.mxu0 %v174
        %429 = vmatpush.msra.mxu0 %v173
        %430 = vmatpush.msra.mxu0 %v172
        %431 = vmatpush.msra.mxu0 %v171
        %432 = vmatmul.f32.gmra.mxu0 %v414
        %v433 = vpop.f32.mrf.mxu0
        %v434 = vadd.f32 0.0, %v433
        %435 = vmatmul.f32.gmra.mxu0 %v415
        %v436 = vpop.f32.mrf.mxu0
        %v437 = vadd.f32 0.0, %v436
        %438 = vdwg.mxu0
        %439 = vrot.lane.b32.xlu0 %v434, 3
        %v440 = vpop.permute.xlu0 %439
        %441 = vrot.lane.b32.xlu0 %v437, 3
        %v442 = vpop.permute.xlu0 %441
        %443 = vset.pattern.permute.xlu0 16
        %444 = vperm.xlu0 %443, %v168
        %v445 = vpop.permute.xlu0 %444
        %447 = vset.pattern.permute.xlu0 16
        %448 = vperm.xlu0 %447, %v169
        %v449 = vpop.permute.xlu0 %448
        %v451 = vmul.f32 %v445, %v440
        %v452 = vmul.f32 %v449, %v442
        %v453 = vadd.f32 %v451, 0.0
        %v454 = vadd.f32 %v452, 0.0
        %455 = vrot.lane.b32.xlu0 %v434, 2
        %v456 = vpop.permute.xlu0 %455
        %457 = vrot.lane.b32.xlu0 %v437, 2
        %v458 = vpop.permute.xlu0 %457
        %459 = vset.pattern.permute.xlu0 17
        %460 = vperm.xlu0 %459, %v168
        %v461 = vpop.permute.xlu0 %460
        %463 = vset.pattern.permute.xlu0 17
        %464 = vperm.xlu0 %463, %v169
        %v465 = vpop.permute.xlu0 %464
        %v467 = vmul.f32 %v461, %v456
        %v468 = vmul.f32 %v465, %v458
        %v469 = vadd.f32 %v453, %v467
        %v470 = vadd.f32 %v454, %v468
        %471 = vrot.lane.b32.xlu0 %v434, 1
        %v472 = vpop.permute.xlu0 %471
        %473 = vrot.lane.b32.xlu0 %v437, 1
        %v474 = vpop.permute.xlu0 %473
        %475 = vset.pattern.permute.xlu0 18
        %476 = vperm.xlu0 %475, %v168
        %v477 = vpop.permute.xlu0 %476
        %479 = vset.pattern.permute.xlu0 18
        %480 = vperm.xlu0 %479, %v169
        %v481 = vpop.permute.xlu0 %480
        %v483 = vmul.f32 %v477, %v472
        %v484 = vmul.f32 %v481, %v474
        %v485 = vadd.f32 %v469, %v483
        %v486 = vadd.f32 %v470, %v484
        %487 = vset.pattern.permute.xlu0 19
        %488 = vperm.xlu0 %487, %v168
        %v489 = vpop.permute.xlu0 %488
        %491 = vset.pattern.permute.xlu0 19
        %492 = vperm.xlu0 %491, %v169
        %v493 = vpop.permute.xlu0 %492
        %v495 = vmul.f32 %v489, %v434
        %v496 = vmul.f32 %v493, %v437
        %v497 = vadd.f32 %v485, %v495
        %v498 = vadd.f32 %v486, %v496
        %499 = vrot.lane.b32.xlu0 %v434, 127
        %v500 = vpop.permute.xlu0 %499
        %501 = vrot.lane.b32.xlu0 %v437, 127
        %v502 = vpop.permute.xlu0 %501
        %503 = vset.pattern.permute.xlu0 20
        %504 = vperm.xlu0 %503, %v168
        %v505 = vpop.permute.xlu0 %504
        %507 = vset.pattern.permute.xlu0 20
        %508 = vperm.xlu0 %507, %v169
        %v509 = vpop.permute.xlu0 %508
        %v511 = vmul.f32 %v505, %v500
        %v512 = vmul.f32 %v509, %v502
        %v513 = vadd.f32 %v497, %v511
        %v514 = vadd.f32 %v498, %v512
        %515 = vrot.lane.b32.xlu0 %v434, 126
        %v516 = vpop.permute.xlu0 %515
        %517 = vrot.lane.b32.xlu0 %v437, 126
        %v518 = vpop.permute.xlu0 %517
        %519 = vset.pattern.permute.xlu0 21
        %520 = vperm.xlu0 %519, %v168
        %v521 = vpop.permute.xlu0 %520
        %523 = vset.pattern.permute.xlu0 21
        %524 = vperm.xlu0 %523, %v169
        %v525 = vpop.permute.xlu0 %524
        %v527 = vmul.f32 %v521, %v516
        %v528 = vmul.f32 %v525, %v518
        %v529 = vadd.f32 %v513, %v527
        %v530 = vadd.f32 %v514, %v528
        %531 = vrot.lane.b32.xlu0 %v434, 125
        %v532 = vpop.permute.xlu0 %531
        %533 = vrot.lane.b32.xlu0 %v437, 125
        %v534 = vpop.permute.xlu0 %533
        %535 = vset.pattern.permute.xlu0 22
        %536 = vperm.xlu0 %535, %v168
        %v537 = vpop.permute.xlu0 %536
        %539 = vset.pattern.permute.xlu0 22
        %540 = vperm.xlu0 %539, %v169
        %v541 = vpop.permute.xlu0 %540
        %v543 = vmul.f32 %v537, %v532
        %v544 = vmul.f32 %v541, %v534
        %v545 = vadd.f32 %v529, %v543
        %v546 = vadd.f32 %v530, %v544
        %vm547 = vcmp.lt.s32.totalorder %v251, 32
        %v548 = vsel %vm547, %v545, 0.0
        %v549 = vsel %vm547, %v546, 0.0
        %550 = vset.pattern.permute.xlu0 23
        %551 = vperm.xlu0 %550, %v168
        %v552 = vpop.permute.xlu0 %551
        %554 = vset.pattern.permute.xlu0 23
        %555 = vperm.xlu0 %554, %v169
        %v556 = vpop.permute.xlu0 %555
        %558 = vrot.lane.b32.xlu0 %v168, 104
        %v559 = vpop.permute.xlu0 %558
        %560 = vrot.lane.b32.xlu0 %v169, 104
        %v561 = vpop.permute.xlu0 %560
        %vm562 = vcmask 130048
        %v563 = vsel %vm562, %v559, 0
        %v565 = vsel %vm562, %v561, 0
        %567 = vmatpush.msra.mxu0 0.0
        %568 = vmatpush.msra.mxu0 0.0
        %569 = vmatpush.msra.mxu0 0.0
        %570 = vmatpush.msra.mxu0 0.0
        %571 = vmatpush.msra.mxu0 0.0
        %572 = vmatpush.msra.mxu0 0.0
        %573 = vmatpush.msra.mxu0 0.0
        %574 = vmatpush.msra.mxu0 0.0
        %575 = vmatpush.msra.mxu0 0.0
        %576 = vmatpush.msra.mxu0 0.0
        %577 = vmatpush.msra.mxu0 0.0
        %578 = vmatpush.msra.mxu0 0.0
        %579 = vmatpush.msra.mxu0 0.0
        %580 = vmatpush.msra.mxu0 0.0
        %581 = vmatpush.msra.mxu0 %v549
        %582 = vmatpush.msra.mxu0 %v548
        %583 = vmatmul.f32.gmra.mxu0 %v563
        %v584 = vpop.f32.mrf.mxu0
        %v585 = vadd.f32 %v552, %v584
        %586 = vmatmul.f32.gmra.mxu0 %v565
        %v587 = vpop.f32.mrf.mxu0
        %v588 = vadd.f32 %v556, %v587
        %589 = vdwg.mxu0
        %vm590 = vcmp.gt.f32.partialorder %v585, 0.0
        %vm591 = vcmp.gt.f32.partialorder %v588, 0.0
        %v592 = vmin.f32 %v585, 0.0
        %v593 = vmin.f32 %v588, 0.0
        %v594 = vmul.f32 %v592, 1.442695
        %v595 = vpow.pop %v594
        %v596 = vmul.f32 %v593, 1.442695
        %v597 = vpow.pop %v596
        %v598 = vsub.f32 %v595, 1.0
        %v599 = vsub.f32 %v597, 1.0
        %v600 = vsel %vm590, %v585, %v598
        %v601 = vsel %vm591, %v588, %v599
        %v602 = vlaneseq
        %vm603 = vcmp.ge.s32.totalorder %v602, 0
        %vm604 = vcmp.lt.s32.totalorder %v602, 32
        %vm605 = vmand %vm603, %vm604
        %606 = vst.msk [vmem:[#allocation2] sm:$0x1] %vm605, %v600
        %608 = vst [vmem:[#allocation1] sm:$0xff] %v600
        %s609 = scalar_lea.vmem [#allocation1], 1
        %v610 = vld [vmem:[%s609] ss:$9 sm:$0xff]
        %611 = vrot.lane.b32.xlu0 %v610, 32
        %v612 = vpop.permute.xlu0 %611
        %vm614 = vcmp.ge.s32.totalorder %v602, 32
        %vm615 = vcmp.lt.s32.totalorder %v602, 64
        %vm616 = vmand %vm614, %vm615
        %617 = vst.msk [vmem:[#allocation2] sm:$0x1] %vm616, %v612
        %618 = vst [vmem:[#allocation1] sm:$0xff] %v600
        %s619 = scalar_lea.vmem [#allocation1], 2
        %v620 = vld [vmem:[%s619] ss:$9 sm:$0xff]
        %621 = vrot.lane.b32.xlu0 %v620, 64
        %v622 = vpop.permute.xlu0 %621
        %vm624 = vcmp.ge.s32.totalorder %v602, 64
        %vm625 = vcmp.lt.s32.totalorder %v602, 96
        %vm626 = vmand %vm624, %vm625
        %627 = vst.msk [vmem:[#allocation2] sm:$0x1] %vm626, %v622
        %628 = vst [vmem:[#allocation1] sm:$0xff] %v600
        %s629 = scalar_lea.vmem [#allocation1], 3
        %v630 = vld [vmem:[%s629] ss:$9 sm:$0xff]
        %631 = vrot.lane.b32.xlu0 %v630, 96
        %v632 = vpop.permute.xlu0 %631
        %vm634 = vcmp.ge.s32.totalorder %v602, 96
        %vm635 = vcmp.lt.s32.totalorder %v602, 128
        %vm636 = vmand %vm634, %vm635
        %637 = vst.msk [vmem:[#allocation2] sm:$0x1] %vm636, %v632
        %638 = vst [vmem:[#allocation1] sm:$0xff] %v600
        %s639 = scalar_lea.vmem [#allocation1], 4
        %v640 = vld [vmem:[%s639] ss:$9 sm:$0xff]
        %642 = vst.msk [vmem:[#allocation2 + $0x1] sm:$0x1] %vm605, %v640
        %643 = vst [vmem:[#allocation1] sm:$0xff] %v600
        %s644 = scalar_lea.vmem [#allocation1], 5
        %v645 = vld [vmem:[%s644] ss:$9 sm:$0xff]
        %646 = vrot.lane.b32.xlu0 %v645, 32
        %v647 = vpop.permute.xlu0 %646
        %649 = vst.msk [vmem:[#allocation2 + $0x1] sm:$0x1] %vm616, %v647
        %650 = vst [vmem:[#allocation1] sm:$0xff] %v600
        %s651 = scalar_lea.vmem [#allocation1], 6
        %v652 = vld [vmem:[%s651] ss:$9 sm:$0xff]
        %653 = vrot.lane.b32.xlu0 %v652, 64
        %v654 = vpop.permute.xlu0 %653
        %656 = vst.msk [vmem:[#allocation2 + $0x1] sm:$0x1] %vm626, %v654
        %657 = vst [vmem:[#allocation1] sm:$0xff] %v600
        %s658 = scalar_lea.vmem [#allocation1], 7
        %v659 = vld [vmem:[%s658] ss:$9 sm:$0xff]
        %660 = vrot.lane.b32.xlu0 %v659, 96
        %v661 = vpop.permute.xlu0 %660
        %663 = vst.msk [vmem:[#allocation2 + $0x1] sm:$0x1] %vm636, %v661
        %664 = vst.msk [vmem:[#allocation2 + $0x2] sm:$0x1] %vm605, %v601
        %666 = vst [vmem:[#allocation1] sm:$0xff] %v601
        %s667 = scalar_lea.vmem [#allocation1], 1
        %v668 = vld [vmem:[%s667] ss:$9 sm:$0xff]
        %669 = vrot.lane.b32.xlu0 %v668, 32
        %v670 = vpop.permute.xlu0 %669
        %672 = vst.msk [vmem:[#allocation2 + $0x2] sm:$0x1] %vm616, %v670
        %673 = vst [vmem:[#allocation1] sm:$0xff] %v601
        %s674 = scalar_lea.vmem [#allocation1], 2
        %v675 = vld [vmem:[%s674] ss:$9 sm:$0xff]
        %676 = vrot.lane.b32.xlu0 %v675, 64
        %v677 = vpop.permute.xlu0 %676
        %679 = vst.msk [vmem:[#allocation2 + $0x2] sm:$0x1] %vm626, %v677
        %680 = vst [vmem:[#allocation1] sm:$0xff] %v601
        %s681 = scalar_lea.vmem [#allocation1], 3
        %v682 = vld [vmem:[%s681] ss:$9 sm:$0xff]
        %683 = vrot.lane.b32.xlu0 %v682, 96
        %v684 = vpop.permute.xlu0 %683
        %686 = vst.msk [vmem:[#allocation2 + $0x2] sm:$0x1] %vm636, %v684
        %687 = vst [vmem:[#allocation1] sm:$0xff] %v601
        %s688 = scalar_lea.vmem [#allocation1], 4
        %v689 = vld [vmem:[%s688] ss:$9 sm:$0xff]
        %691 = vst.msk [vmem:[#allocation2 + $0x3] sm:$0x1] %vm605, %v689
        %692 = vst [vmem:[#allocation1] sm:$0xff] %v601
        %s693 = scalar_lea.vmem [#allocation1], 5
        %v694 = vld [vmem:[%s693] ss:$9 sm:$0xff]
        %695 = vrot.lane.b32.xlu0 %v694, 32
        %v696 = vpop.permute.xlu0 %695
        %698 = vst.msk [vmem:[#allocation2 + $0x3] sm:$0x1] %vm616, %v696
        %699 = vst [vmem:[#allocation1] sm:$0xff] %v601
        %s700 = scalar_lea.vmem [#allocation1], 6
        %v701 = vld [vmem:[%s700] ss:$9 sm:$0xff]
        %702 = vrot.lane.b32.xlu0 %v701, 64
        %v703 = vpop.permute.xlu0 %702
        %705 = vst.msk [vmem:[#allocation2 + $0x3] sm:$0x1] %vm626, %v703
        %706 = vst [vmem:[#allocation1] sm:$0xff] %v601
        %s707 = scalar_lea.vmem [#allocation1], 7
        %v708 = vld [vmem:[%s707] ss:$9 sm:$0xff]
        %709 = vrot.lane.b32.xlu0 %v708, 96
        %v710 = vpop.permute.xlu0 %709
        %712 = vst.msk [vmem:[#allocation2 + $0x3] sm:$0x1] %vm636, %v710
        %v713 = vld [vmem:[#allocation2] sm:$0xf]
        %v714 = vld [vmem:[%s2] sm:$0xff]
        %v715 = vld [vmem:[%s2 + $0x8] sm:$0xff]
        %v716 = vld [vmem:[%s2 + $0x10] sm:$0xff]
        %v717 = vld [vmem:[%s2 + $0x18] sm:$0xff]
        %v718 = vld [vmem:[%s2 + $0x20] sm:$0xff]
        %v719 = vld [vmem:[%s2 + $0x28] sm:$0xff]
        %v720 = vld [vmem:[%s2 + $0x30] sm:$0xff]
        %v721 = vld [vmem:[%s2 + $0x38] sm:$0xff]
        %v722 = vld [vmem:[%s2 + $0x40] sm:$0xff]
        %v723 = vld [vmem:[%s2 + $0x48] sm:$0xff]
        %v724 = vld [vmem:[%s2 + $0x50] sm:$0xff]
        %v725 = vld [vmem:[%s2 + $0x58] sm:$0xff]
        %v726 = vld [vmem:[%s2 + $0x60] sm:$0xff]
        %v727 = vld [vmem:[%s2 + $0x68] sm:$0xff]
        %v728 = vld [vmem:[%s2 + $0x70] sm:$0xff]
        %v729 = vld [vmem:[%s2 + $0x78] sm:$0xff]
        %v730 = vld [vmem:[%s2 + $0x80] sm:$0xff]
        %v731 = vld [vmem:[%s2 + $0x88] sm:$0xff]
        %v732 = vld [vmem:[%s2 + $0x90] sm:$0xff]
        %v733 = vld [vmem:[%s2 + $0x98] sm:$0xff]
        %v734 = vld [vmem:[%s2 + $0xa0] sm:$0xff]
        %v735 = vld [vmem:[%s2 + $0xa8] sm:$0xff]
        %v736 = vld [vmem:[%s2 + $0xb0] sm:$0xff]
        %v737 = vld [vmem:[%s2 + $0xb8] sm:$0xff]
        %v738 = vld [vmem:[%s2 + $0xc0] sm:$0xff]
        %v739 = vld [vmem:[%s2 + $0xc8] sm:$0xff]
        %v740 = vld [vmem:[%s2 + $0xd0] sm:$0xff]
        %v741 = vld [vmem:[%s2 + $0xd8] sm:$0xff]
        %v742 = vld [vmem:[%s2 + $0xe0] sm:$0xff]
        %v743 = vld [vmem:[%s2 + $0xe8] sm:$0xff]
        %v744 = vld [vmem:[%s2 + $0xf0] sm:$0xff]
        %v745 = vld [vmem:[%s2 + $0xf8] sm:$0xff]
        %v746 = vld [vmem:[%s2 + $0x100] sm:$0xff]
        %v747 = vld [vmem:[%s2 + $0x108] sm:$0xff]
        %v748 = vld [vmem:[%s2 + $0x110] sm:$0xff]
        %v749 = vld [vmem:[%s2 + $0x118] sm:$0xff]
        %v750 = vld [vmem:[%s2 + $0x120] sm:$0xff]
        %v751 = vld [vmem:[%s2 + $0x128] sm:$0xff]
        %v752 = vld [vmem:[%s2 + $0x130] sm:$0xff]
        %v753 = vld [vmem:[%s2 + $0x138] sm:$0xff]
        %v754 = vld [vmem:[%s2 + $0x140] sm:$0xff]
        %v755 = vld [vmem:[%s2 + $0x148] sm:$0xff]
        %v756 = vld [vmem:[%s2 + $0x150] sm:$0xff]
        %v757 = vld [vmem:[%s2 + $0x158] sm:$0xff]
        %v758 = vld [vmem:[%s2 + $0x160] sm:$0xff]
        %v759 = vld [vmem:[%s2 + $0x168] sm:$0xff]
        %v760 = vld [vmem:[%s2 + $0x170] sm:$0xff]
        %v761 = vld [vmem:[%s2 + $0x178] sm:$0xff]
        %v762 = vld [vmem:[%s2 + $0x180] sm:$0xff]
        %v763 = vld [vmem:[%s2 + $0x188] sm:$0xff]
        %v764 = vld [vmem:[%s2 + $0x190] sm:$0xff]
        %v765 = vld [vmem:[%s2 + $0x198] sm:$0xff]
        %v766 = vld [vmem:[%s2 + $0x1a0] sm:$0xff]
        %v767 = vld [vmem:[%s2 + $0x1a8] sm:$0xff]
        %v768 = vld [vmem:[%s2 + $0x1b0] sm:$0xff]
        %v769 = vld [vmem:[%s2 + $0x1b8] sm:$0xff]
        %v770 = vld [vmem:[%s2 + $0x1c0] sm:$0xff]
        %v771 = vld [vmem:[%s2 + $0x1c8] sm:$0xff]
        %v772 = vld [vmem:[%s2 + $0x1d0] sm:$0xff]
        %v773 = vld [vmem:[%s2 + $0x1d8] sm:$0xff]
        %v774 = vld [vmem:[%s2 + $0x1e0] sm:$0xff]
        %v775 = vld [vmem:[%s2 + $0x1e8] sm:$0xff]
        %v776 = vld [vmem:[%s2 + $0x1f0] sm:$0xff]
        %v777 = vld [vmem:[%s2 + $0x1f8] sm:$0xff]
        %v779 = vperm.slane %v713, 0
        %v780 = vperm.slane %v713, 1
        %v781 = vperm.slane %v713, 2
        %v782 = vperm.slane %v713, 3
        %788 = vrot.lane.b32.xlu0 %v170, 88
        %v789 = vpop.permute.xlu0 %788
        %791 = vmatpush.msra.mxu0 %v729
        %792 = vmatpush.msra.mxu0 %v728
        %793 = vmatpush.msra.mxu0 %v727
        %794 = vmatpush.msra.mxu0 %v726
        %795 = vmatpush.msra.mxu0 %v725
        %796 = vmatpush.msra.mxu0 %v724
        %797 = vmatpush.msra.mxu0 %v723
        %798 = vmatpush.msra.mxu0 %v722
        %799 = vmatpush.msra.mxu0 %v721
        %800 = vmatpush.msra.mxu0 %v720
        %801 = vmatpush.msra.mxu0 %v719
        %802 = vmatpush.msra.mxu0 %v718
        %803 = vmatpush.msra.mxu0 %v717
        %804 = vmatpush.msra.mxu0 %v716
        %805 = vmatpush.msra.mxu0 %v715
        %806 = vmatpush.msra.mxu0 %v714
        %807 = vmatmul.f32.gmra.mxu0 %v779
        %v808 = vpop.f32.mrf.mxu0
        %v809 = vadd.f32 %v789, %v808
        %810 = vdwg.mxu0
        %811 = vmatpush.msra.mxu0 %v745
        %812 = vmatpush.msra.mxu0 %v744
        %813 = vmatpush.msra.mxu0 %v743
        %814 = vmatpush.msra.mxu0 %v742
        %815 = vmatpush.msra.mxu0 %v741
        %816 = vmatpush.msra.mxu0 %v740
        %817 = vmatpush.msra.mxu0 %v739
        %818 = vmatpush.msra.mxu0 %v738
        %819 = vmatpush.msra.mxu0 %v737
        %820 = vmatpush.msra.mxu0 %v736
        %821 = vmatpush.msra.mxu0 %v735
        %822 = vmatpush.msra.mxu0 %v734
        %823 = vmatpush.msra.mxu0 %v733
        %824 = vmatpush.msra.mxu0 %v732
        %825 = vmatpush.msra.mxu0 %v731
        %826 = vmatpush.msra.mxu0 %v730
        %827 = vmatmul.f32.gmra.mxu0 %v780
        %v828 = vpop.f32.mrf.mxu0
        %v829 = vadd.f32 %v809, %v828
        %830 = vdwg.mxu0
        %831 = vmatpush.msra.mxu0 %v761
        %832 = vmatpush.msra.mxu0 %v760
        %833 = vmatpush.msra.mxu0 %v759
        %834 = vmatpush.msra.mxu0 %v758
        %835 = vmatpush.msra.mxu0 %v757
        %836 = vmatpush.msra.mxu0 %v756
        %837 = vmatpush.msra.mxu0 %v755
        %838 = vmatpush.msra.mxu0 %v754
        %839 = vmatpush.msra.mxu0 %v753
        %840 = vmatpush.msra.mxu0 %v752
        %841 = vmatpush.msra.mxu0 %v751
        %842 = vmatpush.msra.mxu0 %v750
        %843 = vmatpush.msra.mxu0 %v749
        %844 = vmatpush.msra.mxu0 %v748
        %845 = vmatpush.msra.mxu0 %v747
        %846 = vmatpush.msra.mxu0 %v746
        %847 = vmatmul.f32.gmra.mxu0 %v781
        %v848 = vpop.f32.mrf.mxu0
        %v849 = vadd.f32 %v829, %v848
        %850 = vdwg.mxu0
        %851 = vmatpush.msra.mxu0 %v777
        %852 = vmatpush.msra.mxu0 %v776
        %853 = vmatpush.msra.mxu0 %v775
        %854 = vmatpush.msra.mxu0 %v774
        %855 = vmatpush.msra.mxu0 %v773
        %856 = vmatpush.msra.mxu0 %v772
        %857 = vmatpush.msra.mxu0 %v771
        %858 = vmatpush.msra.mxu0 %v770
        %859 = vmatpush.msra.mxu0 %v769
        %860 = vmatpush.msra.mxu0 %v768
        %861 = vmatpush.msra.mxu0 %v767
        %862 = vmatpush.msra.mxu0 %v766
        %863 = vmatpush.msra.mxu0 %v765
        %864 = vmatpush.msra.mxu0 %v764
        %865 = vmatpush.msra.mxu0 %v763
        %866 = vmatpush.msra.mxu0 %v762
        %867 = vmatmul.f32.gmra.mxu0 %v782
        %v868 = vpop.f32.mrf.mxu0
        %v869 = vadd.f32 %v849, %v868
        %870 = vdwg.mxu0
        %vm871 = vcmask 253952
        %872 = vst.msk [vmem:[%s162] sm:$0x1] %vm871, %v869
        %s873 = sand.u32 %s93, 1
        %s874 = scalar_lea.sflag [#allocation4], %s873
        %s875 = sand.u32 %s93, 1
        %s876 = scalar_lea.vmem [#allocation3], %s875
        // Predicated region
        $region33: #{tpu_custom_call.1} parent=31 // pred_check
          %p877 = pneg %p103
        $region34: #{tpu_custom_call.1} parent=31 // pred_check_branch
          %879 = sbr.rel (%p877) target = $region36
        $region35: #{tpu_custom_call.1} parent=31 // pred_region
          %881 = vsyncadd %s874, 0
          %s882 = scalar_lea.hbm %s3, %s17
          %s884 = sshll.u32 %s876, 4
          %s885 = int_to_ptr.vmem [resolvable:$true] %s884
          %s886 = sshll.u32 %s882, 4
          %s887 = int_to_ptr.hbm [resolvable:$true] %s886
          %889 = dma.vmem_to_hbm [thread:$0]  %s885, 16, %s887, %s874
        $region36: #{tpu_custom_call.1} parent=31 // pred_fallthru
          _
      $region32: #{tpu_custom_call.1} parent=5 // pred_fallthru
        _
      %p890 = scmp.le.s32.totalorder 2, %s12
      // Predicated region
      $region37: #{tpu_custom_call.1} parent=5 // pred_check
        %p891 = pneg %p890
      $region38: #{tpu_custom_call.1} parent=5 // pred_check_branch
        %893 = sbr.rel (%p891) target = $region40
      $region39: #{tpu_custom_call.1} parent=5 // pred_region
        %s894 = ssub.s32 %s12, 2
        // Predicated region
        $region41: #{tpu_custom_call.1} parent=39 // pred_check
          %p895 = pneg %p109
        $region42: #{tpu_custom_call.1} parent=39 // pred_check_branch
          %897 = sbr.rel (%p895) target = $region44
        $region43: #{tpu_custom_call.1} parent=39 // pred_region
          %s898 = sand.u32 %s94, 1
          %s899 = scalar_lea.sflag [#allocation4], %s898
          %s900 = sand.u32 %s94, 1
          %s901 = scalar_lea.vmem [#allocation3], %s900
          %903 = dma.done %s899, 16
        $region44: #{tpu_custom_call.1} parent=39 // pred_fallthru
          _
      $region40: #{tpu_custom_call.1} parent=5 // pred_fallthru
        _
    $region6: #{tpu_custom_call.1} parent=1 // loop_footer
      %s16 = sadd.s32 1, %s12
    $region7: #{tpu_custom_call.1} parent=1 // loop_footer_branch
      %11 = sbr.rel target = $region3
    $region8: #{tpu_custom_call.1} parent=1 // loop_exit
      _
    %904 = vsyncpa [#allocation4], 1
    %s905 = scalar_lea.sflag [#allocation4], 1
    %906 = vsyncpa %s905, 1

</llo_original>
